<compile_context>
chip_gen: v7x
topology: tpu7x:2x2x1
jax: 0.10.0
libtpu: 0.0.40
codegen_flags: <defaults>
</compile_context>

<pallas_src>
import functools

import jax
import jax.numpy as jnp
from jax.experimental import pallas as pl
from jax.experimental.pallas import tpu as pltpu

_ROW_MASK_NEG = -1e30    # masked-token rows (reference adds -1e32; softmax is shift-inv.)
_COL_MASK_NEG = -3.0e38  # lane-padding columns: far below row mask, exp underflows to 0


def _round_up(x, m):
    return ((x + m - 1) // m) * m


def _cdiv(a, b):
    return (a + b - 1) // b


def _pick_tile_n(n_tokens, requested, sublane):
    """Sublane-aligned token tile, capped at the token count, preferring an even tile
    count so the 'parallel' grid axis splits across both TensorCores on v7x."""
    tile = _round_up(max(min(requested, n_tokens), 1), sublane)
    n_tiles = _cdiv(n_tokens, tile)
    if n_tiles % 2 == 1:
        if n_tiles == 1:
            if n_tokens >= 2 * sublane:
                cand = _round_up(_cdiv(n_tokens, 2), sublane)
                if _cdiv(n_tokens, cand) == 2:
                    tile = cand
        else:
            cand = _round_up(_cdiv(n_tokens, n_tiles + 1), sublane)
            if _cdiv(n_tokens, cand) % 2 == 0:
                tile = cand
    return tile


def _decoder_kernel(h_ref, w_ref, b_ref, cb_ref, m_ref, *rest,
                    pad_id, tile_n, n_tokens, compute_loss):
    if compute_loss:
        lab_ref, prob_ref, loss_ref = rest
    else:
        (prob_ref,) = rest

    # Linear: MXU matmul in the streamed dtype, f32 accumulation.  (tile_n, Cp)
    acc = jnp.dot(h_ref[...], w_ref[...], preferred_element_type=jnp.float32)

    # Row (padding-token) mask + bias, then the precomputed additive lane-padding
    # column bias (0 for real tags, -3e38 for padded lanes) so masked rows still
    # normalize over the real num_tags columns and padded-lane probs are exactly 0.
    mask = m_ref[...]                                               # (tile_n, 1) f32
    logits = jnp.where(mask > 0.0, acc + b_ref[...], _ROW_MASK_NEG) + cb_ref[...]

    # Numerically stable softmax over the (lane-padded) tag axis; exact divide.
    mx = jnp.max(logits, axis=-1, keepdims=True)
    ex = jnp.exp(logits - mx)
    denom = jnp.sum(ex, axis=-1, keepdims=True)
    prob_ref[...] = (ex * pl.reciprocal(denom, approx=False)).astype(prob_ref.dtype)

    if compute_loss:
        labels = lab_ref[...]                                       # (tile_n, 1) int32
        # Ragged-tail guard: rows past the true token count hold garbage (partial
        # last block) -> gate them out of the loss partials with a select (so any
        # NaN/Inf from garbage inputs cannot propagate into the sums).
        row = pl.program_id(0) * tile_n + jax.lax.broadcasted_iota(
            jnp.int32, labels.shape, 0)
        valid = jnp.logical_and(row < n_tokens, labels != pad_id)   # (tile_n, 1)

        lse = mx + jnp.log(denom)                                   # (tile_n, 1)
        # Gather logits[label] without a one-hot f32 tensor.  Labels are assumed
        # in-range [0, num_tags) (out-of-range labels would silently pick 0).
        col = jax.lax.broadcasted_iota(jnp.int32, logits.shape, 1)
        picked = jnp.sum(jnp.where(col == labels, logits, 0.0), axis=-1, keepdims=True)
        nll = jnp.where(valid, lse - picked, 0.0)
        cnt = jnp.where(valid, 1.0, 0.0)

        # Per-tile scalars packed lane-dense in one (1, 1, 128) row:
        #   lane 0 = sum of valid NLL, lane 1 = number of valid tokens.
        lane = jax.lax.broadcasted_iota(jnp.int32, loss_ref.shape, 2)
        loss_ref[...] = jnp.where(lane == 0, jnp.sum(nll),
                                  jnp.where(lane == 1, jnp.sum(cnt), 0.0))


def bert_decoder_forward(hiddens, masks, weight, bias, pad_id, labels=None, *,
                         tile_n=1024, stream_dtype=jnp.bfloat16,
                         keep_lane_padding=False):
    """BertDecoder forward. hiddens: (B, T, H); masks: (B, T) {0,1}; labels: (B, T) or None.
    weight: (num_tags, H) (nn.Linear convention); bias: (num_tags,).
    stream_dtype: dtype the (N, H) activations / (H, Cp) weight are streamed in
      (bf16 default halves the dominant HBM traffic; best when the caller already
      produces bf16 — pass jnp.float32 for bit-faithful f32).  Softmax/loss math is f32.
    Returns (prob,) or (prob, loss); prob dtype = stream_dtype.  loss is 0 (not NaN)
    when every token is ignored."""
    B, T, H = hiddens.shape
    C = weight.shape[0]
    N = B * T
    stream_dtype = jnp.dtype(stream_dtype if stream_dtype is not None else hiddens.dtype)
    compute_loss = labels is not None

    Cp = _round_up(max(C, 1), 128)                      # lane-dense tag axis
    sublane = 16 if stream_dtype == jnp.bfloat16 else 8
    tile_n = _pick_tile_n(N, tile_n, sublane)
    n_tiles = _cdiv(N, tile_n)

    # No jnp.pad of the activations: the ragged last tile is handled in-kernel.
    h2d = hiddens.reshape(N, H).astype(stream_dtype)
    w_t = jnp.zeros((H, Cp), stream_dtype).at[:, :C].set(
        jnp.transpose(weight).astype(stream_dtype))
    b2d = jnp.zeros((1, Cp), jnp.float32).at[:, :C].set(bias.astype(jnp.float32))
    cb2d = jnp.where(jnp.arange(Cp)[None, :] < C, 0.0, _COL_MASK_NEG).astype(jnp.float32)
    m2d = masks.reshape(N, 1).astype(jnp.float32)

    # TODO(synk): give the VMEM-resident weight/bias specs pipeline_mode=pl.Buffered(1)
    # once single-buffered pipeline_mode is verified on this toolchain (small VMEM win).
    in_specs = [
        pl.BlockSpec((tile_n, H), lambda i: (i, 0)),    # hiddens tile (streamed)
        pl.BlockSpec((H, Cp), lambda i: (0, 0)),        # weight (VMEM-resident)
        pl.BlockSpec((1, Cp), lambda i: (0, 0)),        # bias (VMEM-resident)
        pl.BlockSpec((1, Cp), lambda i: (0, 0)),        # column-padding bias (resident)
        pl.BlockSpec((tile_n, 1), lambda i: (i, 0)),    # token mask tile
    ]
    inputs = [h2d, w_t, b2d, cb2d, m2d]
    out_shape = [jax.ShapeDtypeStruct((N, Cp), stream_dtype)]
    out_specs = [pl.BlockSpec((tile_n, Cp), lambda i: (i, 0))]

    if compute_loss:
        lab2d = labels.reshape(N, 1).astype(jnp.int32)
        inputs.append(lab2d)
        in_specs.append(pl.BlockSpec((tile_n, 1), lambda i: (i, 0)))
        # Per-tile loss partials, lane-dense (1,1,128) row per tile.
        out_shape.append(jax.ShapeDtypeStruct((n_tiles, 1, 128), jnp.float32))
        out_specs.append(pl.BlockSpec((1, 1, 128), lambda i: (i, 0, 0)))

    # VMEM: double-buffered streamed tiles + resident classifier + f32 temporaries.
    itemsize = stream_dtype.itemsize
    streamed = tile_n * (H * itemsize + Cp * itemsize + 4 + (4 if compute_loss else 0))
    resident = H * Cp * itemsize + 2 * Cp * 4
    scratch = 4 * tile_n * Cp * 4                       # f32 logits/exp temporaries
    need = 2 * (streamed + resident) + scratch + (4 << 20)
    vmem_limit = int(min(max(need, 8 << 20), 128 << 20))

    kernel = functools.partial(_decoder_kernel, pad_id=int(pad_id), tile_n=tile_n,
                               n_tokens=N, compute_loss=compute_loss)
    outs = pl.pallas_call(
        kernel,
        grid=(n_tiles,),
        in_specs=in_specs,
        out_shape=tuple(out_shape),
        out_specs=tuple(out_specs),
        compiler_params=pltpu.CompilerParams(
            dimension_semantics=("parallel",),
            vmem_limit_bytes=vmem_limit,
        ),
    )(*inputs)

    prob2d = outs[0]
    if keep_lane_padding or Cp == C:
        prob = prob2d.reshape(B, T, Cp)                 # no extra HBM pass
    else:
        prob = prob2d[:, :C].reshape(B, T, C)

    if not compute_loss:
        return (prob,)
    part = outs[1]                                      # (n_tiles, 1, 128)
    total = jnp.sum(part[:, 0, 0])
    count = jnp.sum(part[:, 0, 1])
    loss = total / jnp.maximum(count, 1.0)              # 0 instead of NaN if all ignored
    return (prob, loss)


def _reference(hiddens, masks, weight, bias, pad_id, labels):
    # Pure-JAX reference of the PyTorch forward.
    logits = jnp.einsum("bth,ch->btc", hiddens, weight) + bias
    logits = logits + (-1e32) * (1.0 - masks)[..., None]
    prob = jax.nn.softmax(logits, axis=-1)
    flat_logits = logits.reshape(-1, logits.shape[-1])
    flat_labels = labels.reshape(-1)
    lse = jax.nn.logsumexp(flat_logits, axis=-1)
    picked = jnp.take_along_axis(flat_logits, flat_labels[:, None], axis=-1)[:, 0]
    nll = lse - picked
    valid = (flat_labels != pad_id).astype(jnp.float32)
    loss = jnp.sum(nll * valid) / jnp.sum(valid)
    return prob, loss


def _make_case(key, B, T, H, num_tags, pad_id):
    k1, k2, k3 = jax.random.split(key, 3)
    hiddens = jax.random.normal(k1, (B, T, H), dtype=jnp.float32)
    lengths = (jax.random.randint(k2, (B,), 2, T + 1)).astype(jnp.int32)
    pos = jnp.arange(T)[None, :]
    masks = (pos < lengths[:, None]).astype(jnp.float32)
    labels = jax.random.randint(k3, (B, T), 1, num_tags).astype(jnp.int32)
    labels = jnp.where(masks > 0, labels, pad_id)
    return hiddens, masks, labels


if __name__ == "__main__":
    B, T, H, num_tags, pad_id = 2, 8, 32, 16, 0
    key = jax.random.PRNGKey(0)
    kcase, kw, kb, kragged = jax.random.split(key, 4)

    hiddens, masks, labels = _make_case(kcase, B, T, H, num_tags, pad_id)
    bound = 1.0 / (H ** 0.5)
    weight = jax.random.uniform(kw, (num_tags, H), jnp.float32, -bound, bound)
    bias = jax.random.uniform(kb, (num_tags,), jnp.float32, -bound, bound)

    # f32 correctness check, small tile so a real multi-tile grid is exercised.
    prob, loss = bert_decoder_forward(hiddens, masks, weight, bias, pad_id, labels,
                                      tile_n=8, stream_dtype=jnp.float32)
    jax.block_until_ready((prob, loss))
    ref_prob, ref_loss = _reference(hiddens, masks, weight, bias, pad_id, labels)
    assert prob.shape == (B, T, num_tags)
    assert jnp.allclose(prob, ref_prob, atol=2e-3, rtol=2e-3), "prob mismatch"
    assert jnp.allclose(loss, ref_loss, atol=1e-4, rtol=1e-4), "loss mismatch"

    # Ragged token count (N = 15, tile_n = 8 -> partial last tile, no padding copy).
    Br, Tr = 3, 5
    h_r, m_r, l_r = _make_case(kragged, Br, Tr, H, num_tags, pad_id)
    prob_r, loss_r = bert_decoder_forward(h_r, m_r, weight, bias, pad_id, l_r,
                                          tile_n=8, stream_dtype=jnp.float32)
    jax.block_until_ready((prob_r, loss_r))
    ref_prob_r, ref_loss_r = _reference(h_r, m_r, weight, bias, pad_id, l_r)
    assert prob_r.shape == (Br, Tr, num_tags)
    assert jnp.allclose(prob_r, ref_prob_r, atol=2e-3, rtol=2e-3), "ragged prob mismatch"
    assert jnp.allclose(loss_r, ref_loss_r, atol=1e-4, rtol=1e-4), "ragged loss mismatch"

    # Inference path (labels=None): prob-only kernel variant, no loss work.
    (prob_only,) = bert_decoder_forward(hiddens, masks, weight, bias, pad_id, None,
                                        tile_n=8, stream_dtype=jnp.float32)
    jax.block_until_ready(prob_only)
    assert jnp.allclose(prob_only, ref_prob, atol=2e-3, rtol=2e-3), "prob-only mismatch"

    # Default production path (bf16 streaming) smoke + loose accuracy check.
    prob_bf16, loss_bf16 = bert_decoder_forward(hiddens, masks, weight, bias, pad_id, labels)
    jax.block_until_ready((prob_bf16, loss_bf16))
    assert prob_bf16.dtype == jnp.bfloat16
    assert bool(jnp.isfinite(loss_bf16))
    assert jnp.allclose(prob_bf16.astype(jnp.float32), ref_prob, atol=5e-2, rtol=5e-2)
    assert jnp.allclose(loss_bf16, ref_loss, atol=5e-2, rtol=5e-2)

    print("KERNEL_OK")
</pallas_src>

<mosaic_0001>
module attributes {stable_mosaic.version = 11 : i64} {
  func.func @_decoder_kernel(%arg0: i32, %arg1: memref<8x32xf32, #tpu.memory_space<vmem>>, %arg2: memref<32x128xf32, #tpu.memory_space<vmem>>, %arg3: memref<1x128xf32, #tpu.memory_space<vmem>>, %arg4: memref<1x128xf32, #tpu.memory_space<vmem>>, %arg5: memref<8x1xf32, #tpu.memory_space<vmem>>, %arg6: memref<8x1xi32, #tpu.memory_space<vmem>>, %arg7: memref<8x128xf32, #tpu.memory_space<vmem>>, %arg8: memref<1x1x128xf32, #tpu.memory_space<vmem>>) attributes {dimension_semantics = [#tpu.dimension_semantics<parallel>], iteration_bounds = array<i64: 2>, scalar_prefetch = 0 : i64, scratch_operands = 0 : i64, tpu.core_type = #tpu.core_type<tc>, window_params = [{transform_indices = @transform_0, window_bounds = array<i64: 8, 32>}, {pipeline_mode = #tpu.pipeline_mode<synchronous>, transform_indices = @transform_1, window_bounds = array<i64: 32, 128>}, {pipeline_mode = #tpu.pipeline_mode<synchronous>, transform_indices = @transform_2, window_bounds = array<i64: 1, 128>}, {pipeline_mode = #tpu.pipeline_mode<synchronous>, transform_indices = @transform_3, window_bounds = array<i64: 1, 128>}, {transform_indices = @transform_4, window_bounds = array<i64: 8, 1>}, {transform_indices = @transform_5, window_bounds = array<i64: 8, 1>}, {transform_indices = @transform_6, window_bounds = array<i64: 8, 128>}, {transform_indices = @transform_7, window_bounds = array<i64: 1, 1, 128>}]} {
    %c0 = arith.constant 0 : index
    %c0_0 = arith.constant 0 : index
    %0 = vector.load %arg1[%c0, %c0_0] : memref<8x32xf32, #tpu.memory_space<vmem>>, vector<8x32xf32>
    %c0_1 = arith.constant 0 : index
    %c0_2 = arith.constant 0 : index
    %1 = vector.load %arg2[%c0_1, %c0_2] : memref<32x128xf32, #tpu.memory_space<vmem>>, vector<32x128xf32>
    %cst = arith.constant dense<0.000000e+00> : vector<8x128xf32>
    %2 = tpu.matmul %0, %1, %cst {dimension_numbers = #tpu.dot_dimension_numbers<[1], [0], [0], [1], [0, 0, 1, 1], [], []>} : vector<8x32xf32>, vector<32x128xf32>, vector<8x128xf32> -> vector<8x128xf32>
    %c0_3 = arith.constant 0 : index
    %c0_4 = arith.constant 0 : index
    %3 = vector.load %arg5[%c0_3, %c0_4] : memref<8x1xf32, #tpu.memory_space<vmem>>, vector<8x1xf32>
    %cst_5 = arith.constant 0.000000e+00 : f32
    %4 = vector.broadcast %cst_5 : f32 to vector<8x1xf32>
    %5 = arith.cmpf ogt, %3, %4 : vector<8x1xf32>
    %c0_6 = arith.constant 0 : index
    %c0_7 = arith.constant 0 : index
    %6 = vector.load %arg3[%c0_6, %c0_7] : memref<1x128xf32, #tpu.memory_space<vmem>>, vector<1x128xf32>
    %7 = vector.broadcast %6 : vector<1x128xf32> to vector<8x128xf32>
    %8 = arith.addf %2, %7 : vector<8x128xf32>
    %cst_8 = arith.constant -1.000000e+30 : f32
    %9 = vector.shape_cast %5 : vector<8x1xi1> to vector<8x1xi1>
    %10 = vector.broadcast %9 : vector<8x1xi1> to vector<8x128xi1>
    %11 = vector.broadcast %cst_8 : f32 to vector<8x128xf32>
    %12 = arith.select %10, %8, %11 : vector<8x128xi1>, vector<8x128xf32>
    %c0_9 = arith.constant 0 : index
    %c0_10 = arith.constant 0 : index
    %13 = vector.load %arg4[%c0_9, %c0_10] : memref<1x128xf32, #tpu.memory_space<vmem>>, vector<1x128xf32>
    %14 = vector.broadcast %13 : vector<1x128xf32> to vector<8x128xf32>
    %15 = arith.addf %12, %14 : vector<8x128xf32>
    %cst_11 = arith.constant dense<0xFF800000> : vector<8xf32>
    %16 = vector.multi_reduction <maximumf>, %15, %cst_11 [1] : vector<8x128xf32> to vector<8xf32>
    %17 = vector.shape_cast %16 : vector<8xf32> to vector<8x1xf32>
    %18 = vector.broadcast %17 : vector<8x1xf32> to vector<8x128xf32>
    %19 = arith.subf %15, %18 : vector<8x128xf32>
    %20 = math.exp %19 : vector<8x128xf32>
    %cst_12 = arith.constant dense<0.000000e+00> : vector<8xf32>
    %21 = vector.multi_reduction <add>, %20, %cst_12 [1] : vector<8x128xf32> to vector<8xf32>
    %22 = vector.shape_cast %21 : vector<8xf32> to vector<8x1xf32>
    %23 = tpu.reciprocal %22 : vector<8x1xf32> -> vector<8x1xf32>
    %24 = vector.broadcast %23 : vector<8x1xf32> to vector<8x128xf32>
    %25 = arith.mulf %20, %24 : vector<8x128xf32>
    %c0_13 = arith.constant 0 : index
    %c0_14 = arith.constant 0 : index
    %26 = vector.load %arg7[%c0_13, %c0_14] : memref<8x128xf32, #tpu.memory_space<vmem>>, vector<8x128xf32>
    tpu.vector_store %arg7[%c0_13, %c0_14], %25 {strides = array<i32>} : memref<8x128xf32, #tpu.memory_space<vmem>>, vector<8x128xf32>,
    %c0_15 = arith.constant 0 : index
    %c0_16 = arith.constant 0 : index
    %27 = vector.load %arg6[%c0_15, %c0_16] : memref<8x1xi32, #tpu.memory_space<vmem>>, vector<8x1xi32>
    %c8_i32 = arith.constant 8 : i32
    %28 = arith.muli %arg0, %c8_i32 : i32
    %29 = tpu.iota {dimensions = array<i32: 0>} : vector<8x1xi32>
    %30 = vector.broadcast %28 : i32 to vector<8x1xi32>
    %31 = arith.addi %30, %29 : vector<8x1xi32>
    %c16_i32 = arith.constant 16 : i32
    %32 = vector.broadcast %c16_i32 : i32 to vector<8x1xi32>
    %33 = arith.cmpi slt, %31, %32 : vector<8x1xi32>
    %c0_i32 = arith.constant 0 : i32
    %34 = vector.broadcast %c0_i32 : i32 to vector<8x1xi32>
    %35 = arith.cmpi ne, %27, %34 : vector<8x1xi32>
    %36 = arith.andi %33, %35 : vector<8x1xi1>
    %37 = math.log %22 : vector<8x1xf32>
    %38 = arith.addf %17, %37 : vector<8x1xf32>
    %39 = tpu.iota {dimensions = array<i32: 1>} : vector<8x128xi32>
    %40 = vector.broadcast %27 : vector<8x1xi32> to vector<8x128xi32>
    %41 = arith.cmpi eq, %39, %40 : vector<8x128xi32>
    %cst_17 = arith.constant 0.000000e+00 : f32
    %42 = vector.broadcast %cst_17 : f32 to vector<8x128xf32>
    %43 = arith.select %41, %15, %42 : vector<8x128xi1>, vector<8x128xf32>
    %cst_18 = arith.constant dense<0.000000e+00> : vector<8xf32>
    %44 = vector.multi_reduction <add>, %43, %cst_18 [1] : vector<8x128xf32> to vector<8xf32>
    %45 = vector.shape_cast %44 : vector<8xf32> to vector<8x1xf32>
    %46 = arith.subf %38, %45 : vector<8x1xf32>
    %cst_19 = arith.constant 0.000000e+00 : f32
    %47 = vector.broadcast %cst_19 : f32 to vector<8x1xf32>
    %48 = arith.select %36, %46, %47 : vector<8x1xi1>, vector<8x1xf32>
    %cst_20 = arith.constant 1.000000e+00 : f32
    %cst_21 = arith.constant 0.000000e+00 : f32
    %49 = vector.broadcast %cst_20 : f32 to vector<8x1xf32>
    %50 = vector.broadcast %cst_21 : f32 to vector<8x1xf32>
    %51 = arith.select %36, %49, %50 : vector<8x1xi1>, vector<8x1xf32>
    %52 = tpu.iota {dimensions = array<i32: 2>} : vector<1x1x128xi32>
    %c0_i32_22 = arith.constant 0 : i32
    %53 = vector.broadcast %c0_i32_22 : i32 to vector<1x1x128xi32>
    %54 = arith.cmpi eq, %52, %53 : vector<1x1x128xi32>
    %55 = vector.shape_cast %48 : vector<8x1xf32> to vector<1x8x1xf32>
    %cst_23 = arith.constant dense<0.000000e+00> : vector<1xf32>
    %56 = vector.multi_reduction <add>, %55, %cst_23 [1, 2] : vector<1x8x1xf32> to vector<1xf32>
    %57 = vector.shape_cast %56 : vector<1xf32> to vector<1x1x1xf32>
    %58 = vector.extract %57[0, 0, 0] : f32 from vector<1x1x1xf32>
    %c1_i32 = arith.constant 1 : i32
    %59 = vector.broadcast %c1_i32 : i32 to vector<1x1x128xi32>
    %60 = arith.cmpi eq, %52, %59 : vector<1x1x128xi32>
    %61 = vector.shape_cast %51 : vector<8x1xf32> to vector<1x8x1xf32>
    %cst_24 = arith.constant dense<0.000000e+00> : vector<1xf32>
    %62 = vector.multi_reduction <add>, %61, %cst_24 [1, 2] : vector<1x8x1xf32> to vector<1xf32>
    %63 = vector.shape_cast %62 : vector<1xf32> to vector<1x1x1xf32>
    %64 = vector.extract %63[0, 0, 0] : f32 from vector<1x1x1xf32>
    %cst_25 = arith.constant 0.000000e+00 : f32
    %65 = vector.broadcast %64 : f32 to vector<1x1x128xf32>
    %66 = vector.broadcast %cst_25 : f32 to vector<1x1x128xf32>
    %67 = arith.select %60, %65, %66 : vector<1x1x128xi1>, vector<1x1x128xf32>
    %68 = vector.broadcast %58 : f32 to vector<1x1x128xf32>
    %69 = arith.select %54, %68, %67 : vector<1x1x128xi1>, vector<1x1x128xf32>
    %c0_26 = arith.constant 0 : index
    %c0_27 = arith.constant 0 : index
    %c0_28 = arith.constant 0 : index
    %70 = vector.load %arg8[%c0_26, %c0_27, %c0_28] : memref<1x1x128xf32, #tpu.memory_space<vmem>>, vector<1x1x128xf32>
    tpu.vector_store %arg8[%c0_26, %c0_27, %c0_28], %69 {strides = array<i32>} : memref<1x1x128xf32, #tpu.memory_space<vmem>>, vector<1x1x128xf32>,
    return
  }
  func.func @transform_0(%arg0: i32) -> (i32, i32) {
    %c0_i32 = arith.constant 0 : i32
    %c0_i32_0 = arith.constant 0 : i32
    return %arg0, %c0_i32 : i32, i32
  }
  func.func @transform_1(%arg0: i32) -> (i32, i32) {
    %c0_i32 = arith.constant 0 : i32
    %c0_i32_0 = arith.constant 0 : i32
    %c0_i32_1 = arith.constant 0 : i32
    return %c0_i32, %c0_i32_0 : i32, i32
  }
  func.func @transform_2(%arg0: i32) -> (i32, i32) {
    %c0_i32 = arith.constant 0 : i32
    %c0_i32_0 = arith.constant 0 : i32
    %c0_i32_1 = arith.constant 0 : i32
    return %c0_i32, %c0_i32_0 : i32, i32
  }
  func.func @transform_3(%arg0: i32) -> (i32, i32) {
    %c0_i32 = arith.constant 0 : i32
    %c0_i32_0 = arith.constant 0 : i32
    %c0_i32_1 = arith.constant 0 : i32
    return %c0_i32, %c0_i32_0 : i32, i32
  }
  func.func @transform_4(%arg0: i32) -> (i32, i32) {
    %c0_i32 = arith.constant 0 : i32
    %c0_i32_0 = arith.constant 0 : i32
    return %arg0, %c0_i32 : i32, i32
  }
  func.func @transform_5(%arg0: i32) -> (i32, i32) {
    %c0_i32 = arith.constant 0 : i32
    %c0_i32_0 = arith.constant 0 : i32
    return %arg0, %c0_i32 : i32, i32
  }
  func.func @transform_6(%arg0: i32) -> (i32, i32) {
    %c0_i32 = arith.constant 0 : i32
    %c0_i32_0 = arith.constant 0 : i32
    return %arg0, %c0_i32 : i32, i32
  }
  func.func @transform_7(%arg0: i32) -> (i32, i32, i32) {
    %c0_i32 = arith.constant 0 : i32
    %c0_i32_0 = arith.constant 0 : i32
    %c0_i32_1 = arith.constant 0 : i32
    return %arg0, %c0_i32, %c0_i32_0 : i32, i32, i32
  }
}

</mosaic_0001>

<llo_original>
// kernel: tpu_custom_call.1
$region0: #{tpu_custom_call.1}
  #allocation0 [shape = 'u32[]', space=smem, size = 0x4, offset = 0x4, fixed_abs, tag = 'smem constant byte address 0x4 - core index']
  #allocation1 [shape = 'u32[144,128]{1,0:T(1,128)}', space=vmem, size = 0x12000, scoped, tag = 'internal scratch']
  %s0 = inlined_call_operand.hbm [shape: f32[16,32], index: 0, kind: input, shape index: {}]
  %s1 = inlined_call_operand.vmem [shape: f32[32,128], index: 1, kind: input, shape index: {}]
  %s2 = inlined_call_operand.vmem [shape: f32[1,128], index: 2, kind: input, shape index: {}]
  %s3 = inlined_call_operand.vmem [shape: f32[1,128], index: 3, kind: input, shape index: {}]
  %s4 = inlined_call_operand.vmem [shape: f32[16,1], index: 4, kind: input, shape index: {}]
  %s5 = inlined_call_operand.vmem [shape: s32[16,1], index: 5, kind: input, shape index: {}]
  %s6 = inlined_call_operand.hbm [shape: f32[16,128], index: 6, kind: output, shape index: {0}]
  %s7 = inlined_call_operand.hbm [shape: f32[2,1,128], index: 7, kind: output, shape index: {1}]
  %8 = xla_tuple %s6, %s7
  %s9 = sld [smem:[#allocation0]]
  $region69: #{tpu_custom_call.1} parent=0
    _
  %s11 = ssub.s32 1, %s9
  %s12 = scalar_select 0, %s11, %s9
  $region1: #{tpu_custom_call.1} parent=0
    #allocation2 [shape = 'u8[8192]{0}', space=vmem, size = 0x2000, scoped, tag = 'input window, operand 0']
    #allocation3 [shape = 's32[2]{0}', space=sflag, size = 0x8, scoped, tag = 'scoped memory for tpu_custom_call.1']
    #allocation4 [shape = 's32[2]{0}', space=sflag, size = 0x8, scoped, tag = 'scoped memory for tpu_custom_call.1']
    #allocation5 [shape = 'u8[8192]{0}', space=vmem, size = 0x2000, scoped, tag = 'output window, operand 0']
    #allocation6 [shape = 'u8[1024]{0}', space=vmem, size = 0x400, scoped, tag = 'output window, operand 1']
    #allocation7 [shape = 's32[2]{0}', space=sflag, size = 0x8, scoped, tag = 'scoped memory for tpu_custom_call.1']
    %13 = vsyncpa [#allocation3], 0
    %s14 = scalar_lea.sflag [#allocation3], 1
    %15 = vsyncpa %s14, 0
    %16 = vsyncpa [#allocation4], 0
    %s17 = scalar_lea.sflag [#allocation4], 1
    %18 = vsyncpa %s17, 0
    %19 = vsyncpa [#allocation7], 0
    %s20 = scalar_lea.sflag [#allocation7], 1
    %21 = vsyncpa %s20, 0
    loop: start=0, step=1, limit=4
    $region2: #{tpu_custom_call.1} parent=1 // loop_pre_header
      _
    $region3: #{tpu_custom_call.1} parent=1 // loop_header
      %s23 = sphi 0, %s27
      %p24 = scmp.ge.s32.totalorder %s23, 4
      %s33 = sphi 0, %s35
      %s36 = sphi 0, %s33
      %s37 = sphi 0, %s36
      %s53 = sphi 0, %s37
      %s57 = sphi 0, %s57
      %s59 = sphi 0, %s57
      %s60 = sphi 0, %s59
      %s74 = sphi 0, %s60
      %s78 = sphi 0, %s78
      %s80 = sphi 0, %s78
      %s81 = sphi 0, %s80
      %s95 = sphi 0, %s81
      %s99 = sphi 0, %s99
      %s101 = sphi 0, %s99
      %s102 = sphi 0, %s101
      %s116 = sphi 0, %s102
      %s122 = sphi 0, %s124
      %s125 = sphi 0, %s122
      %s126 = sphi 0, %s125
      %s142 = sphi 0, %s126
      %s148 = sphi 0, %s150
      %s151 = sphi 0, %s148
      %s152 = sphi 0, %s151
      %s168 = sphi 0, %s152
      %s174 = sphi 0, %s176
      %s177 = sphi 0, %s174
      %s178 = sphi 0, %s177
      %s194 = sphi 0, %s178
      %s200 = sphi 0, %s202
      %s203 = sphi 0, %s200
      %s204 = sphi 0, %s203
      %s220 = sphi 0, %s204
    $region4: #{tpu_custom_call.1} parent=1 // loop_header_branch
      %26 = sbr.rel (%p24) target = $region8
    $region5: #{tpu_custom_call.1} parent=1 // loop_body
      %s28 = ssub.s32 %s23, 1
      %s29 = ssub.s32 %s23, 2
      %s30 = sadd.s32 %s23, 1
      %s31 = ssub.s32 %s23, %s30
      %p32 = scmp.eq.s32.totalorder %s31, 0
      %s34 = sadd.s32 %s33, 1
      %s35 = scalar_select %p32, %s33, %s34
      %p38 = pneg %p32
      %p39 = scmp.eq.s32.totalorder %s23, 1
      %p40 = por %p38, %p39
      %p41 = scmp.ne.s32.totalorder %s33, %s36
      %p42 = scmp.eq.s32.totalorder %s23, 0
      %p43 = por %p41, %p42
      %p44 = scmp.ne.s32.totalorder %s33, %s36
      %p45 = scmp.eq.s32.totalorder %s28, 1
      %p46 = por %p44, %p45
      %p47 = scmp.ne.s32.totalorder %s36, %s37
      %p48 = scmp.eq.s32.totalorder %s28, 0
      %p49 = por %p47, %p48
      %p50 = scmp.ne.s32.totalorder %s36, %s37
      %p51 = scmp.eq.s32.totalorder %s29, 1
      %p52 = por %p50, %p51
      %p54 = scmp.ne.s32.totalorder %s37, %s53
      %p55 = scmp.eq.s32.totalorder %s29, 0
      %p56 = por %p54, %p55
      %s58 = sadd.s32 %s57, 1
      %p61 = scmp.eq.s32.totalorder %s23, 1
      %p62 = scmp.ne.s32.totalorder %s57, %s59
      %p63 = scmp.eq.s32.totalorder %s23, 0
      %p64 = por %p62, %p63
      %p65 = scmp.ne.s32.totalorder %s57, %s59
      %p66 = scmp.eq.s32.totalorder %s28, 1
      %p67 = por %p65, %p66
      %p68 = scmp.ne.s32.totalorder %s59, %s60
      %p69 = scmp.eq.s32.totalorder %s28, 0
      %p70 = por %p68, %p69
      %p71 = scmp.ne.s32.totalorder %s59, %s60
      %p72 = scmp.eq.s32.totalorder %s29, 1
      %p73 = por %p71, %p72
      %p75 = scmp.ne.s32.totalorder %s60, %s74
      %p76 = scmp.eq.s32.totalorder %s29, 0
      %p77 = por %p75, %p76
      %s79 = sadd.s32 %s78, 1
      %p82 = scmp.eq.s32.totalorder %s23, 1
      %p83 = scmp.ne.s32.totalorder %s78, %s80
      %p84 = scmp.eq.s32.totalorder %s23, 0
      %p85 = por %p83, %p84
      %p86 = scmp.ne.s32.totalorder %s78, %s80
      %p87 = scmp.eq.s32.totalorder %s28, 1
      %p88 = por %p86, %p87
      %p89 = scmp.ne.s32.totalorder %s80, %s81
      %p90 = scmp.eq.s32.totalorder %s28, 0
      %p91 = por %p89, %p90
      %p92 = scmp.ne.s32.totalorder %s80, %s81
      %p93 = scmp.eq.s32.totalorder %s29, 1
      %p94 = por %p92, %p93
      %p96 = scmp.ne.s32.totalorder %s81, %s95
      %p97 = scmp.eq.s32.totalorder %s29, 0
      %p98 = por %p96, %p97
      %s100 = sadd.s32 %s99, 1
      %p103 = scmp.eq.s32.totalorder %s23, 1
      %p104 = scmp.ne.s32.totalorder %s99, %s101
      %p105 = scmp.eq.s32.totalorder %s23, 0
      %p106 = por %p104, %p105
      %p107 = scmp.ne.s32.totalorder %s99, %s101
      %p108 = scmp.eq.s32.totalorder %s28, 1
      %p109 = por %p107, %p108
      %p110 = scmp.ne.s32.totalorder %s101, %s102
      %p111 = scmp.eq.s32.totalorder %s28, 0
      %p112 = por %p110, %p111
      %p113 = scmp.ne.s32.totalorder %s101, %s102
      %p114 = scmp.eq.s32.totalorder %s29, 1
      %p115 = por %p113, %p114
      %p117 = scmp.ne.s32.totalorder %s102, %s116
      %p118 = scmp.eq.s32.totalorder %s29, 0
      %p119 = por %p117, %p118
      %s120 = ssub.s32 %s23, %s30
      %p121 = scmp.eq.s32.totalorder %s120, 0
      %s123 = sadd.s32 %s122, 1
      %s124 = scalar_select %p121, %s122, %s123
      %p127 = pneg %p121
      %p128 = scmp.eq.s32.totalorder %s23, 1
      %p129 = por %p127, %p128
      %p130 = scmp.ne.s32.totalorder %s122, %s125
      %p131 = scmp.eq.s32.totalorder %s23, 0
      %p132 = por %p130, %p131
      %p133 = scmp.ne.s32.totalorder %s122, %s125
      %p134 = scmp.eq.s32.totalorder %s28, 1
      %p135 = por %p133, %p134
      %p136 = scmp.ne.s32.totalorder %s125, %s126
      %p137 = scmp.eq.s32.totalorder %s28, 0
      %p138 = por %p136, %p137
      %p139 = scmp.ne.s32.totalorder %s125, %s126
      %p140 = scmp.eq.s32.totalorder %s29, 1
      %p141 = por %p139, %p140
      %p143 = scmp.ne.s32.totalorder %s126, %s142
      %p144 = scmp.eq.s32.totalorder %s29, 0
      %p145 = por %p143, %p144
      %s146 = ssub.s32 %s23, %s30
      %p147 = scmp.eq.s32.totalorder %s146, 0
      %s149 = sadd.s32 %s148, 1
      %s150 = scalar_select %p147, %s148, %s149
      %p153 = pneg %p147
      %p154 = scmp.eq.s32.totalorder %s23, 1
      %p155 = por %p153, %p154
      %p156 = scmp.ne.s32.totalorder %s148, %s151
      %p157 = scmp.eq.s32.totalorder %s23, 0
      %p158 = por %p156, %p157
      %p159 = scmp.ne.s32.totalorder %s148, %s151
      %p160 = scmp.eq.s32.totalorder %s28, 1
      %p161 = por %p159, %p160
      %p162 = scmp.ne.s32.totalorder %s151, %s152
      %p163 = scmp.eq.s32.totalorder %s28, 0
      %p164 = por %p162, %p163
      %p165 = scmp.ne.s32.totalorder %s151, %s152
      %p166 = scmp.eq.s32.totalorder %s29, 1
      %p167 = por %p165, %p166
      %p169 = scmp.ne.s32.totalorder %s152, %s168
      %p170 = scmp.eq.s32.totalorder %s29, 0
      %p171 = por %p169, %p170
      %s172 = ssub.s32 %s23, %s30
      %p173 = scmp.eq.s32.totalorder %s172, 0
      %s175 = sadd.s32 %s174, 1
      %s176 = scalar_select %p173, %s174, %s175
      %p179 = pneg %p173
      %p180 = scmp.eq.s32.totalorder %s23, 1
      %p181 = por %p179, %p180
      %p182 = scmp.ne.s32.totalorder %s174, %s177
      %p183 = scmp.eq.s32.totalorder %s23, 0
      %p184 = por %p182, %p183
      %p185 = scmp.ne.s32.totalorder %s174, %s177
      %p186 = scmp.eq.s32.totalorder %s28, 1
      %p187 = por %p185, %p186
      %p188 = scmp.ne.s32.totalorder %s177, %s178
      %p189 = scmp.eq.s32.totalorder %s28, 0
      %p190 = por %p188, %p189
      %p191 = scmp.ne.s32.totalorder %s177, %s178
      %p192 = scmp.eq.s32.totalorder %s29, 1
      %p193 = por %p191, %p192
      %p195 = scmp.ne.s32.totalorder %s178, %s194
      %p196 = scmp.eq.s32.totalorder %s29, 0
      %p197 = por %p195, %p196
      %s198 = ssub.s32 %s23, %s30
      %p199 = scmp.eq.s32.totalorder %s198, 0
      %s201 = sadd.s32 %s200, 1
      %s202 = scalar_select %p199, %s200, %s201
      %p205 = pneg %p199
      %p206 = scmp.eq.s32.totalorder %s23, 1
      %p207 = por %p205, %p206
      %p208 = scmp.ne.s32.totalorder %s200, %s203
      %p209 = scmp.eq.s32.totalorder %s23, 0
      %p210 = por %p208, %p209
      %p211 = scmp.ne.s32.totalorder %s200, %s203
      %p212 = scmp.eq.s32.totalorder %s28, 1
      %p213 = por %p211, %p212
      %p214 = scmp.ne.s32.totalorder %s203, %s204
      %p215 = scmp.eq.s32.totalorder %s28, 0
      %p216 = por %p214, %p215
      %p217 = scmp.ne.s32.totalorder %s203, %s204
      %p218 = scmp.eq.s32.totalorder %s29, 1
      %p219 = por %p217, %p218
      %p221 = scmp.ne.s32.totalorder %s204, %s220
      %p222 = scmp.eq.s32.totalorder %s29, 0
      %p223 = por %p221, %p222
      %p224 = scmp.le.s32.totalorder 1, %s23
      %p225 = scmp.lt.s32.totalorder %s23, 3
      %p226 = pnand %p224, %p225
      %p227 = pneg %p226
      // Predicated region
      $region9: #{tpu_custom_call.1} parent=5 // pred_check
        _
      $region10: #{tpu_custom_call.1} parent=5 // pred_check_branch
        %229 = sbr.rel (%p226) target = $region12
      $region11: #{tpu_custom_call.1} parent=5 // pred_region
        %s230 = ssub.s32 %s23, 1
        // Predicated region
        $region13: #{tpu_custom_call.1} parent=11 // pred_check
          %p231 = pneg %p70
        $region14: #{tpu_custom_call.1} parent=11 // pred_check_branch
          %233 = sbr.rel (%p231) target = $region16
        $region15: #{tpu_custom_call.1} parent=11 // pred_region
          _
        $region16: #{tpu_custom_call.1} parent=11 // pred_fallthru
          _
        // Predicated region
        $region17: #{tpu_custom_call.1} parent=11 // pred_check
          %p234 = pneg %p91
        $region18: #{tpu_custom_call.1} parent=11 // pred_check_branch
          %236 = sbr.rel (%p234) target = $region20
        $region19: #{tpu_custom_call.1} parent=11 // pred_region
          _
        $region20: #{tpu_custom_call.1} parent=11 // pred_fallthru
          _
        // Predicated region
        $region21: #{tpu_custom_call.1} parent=11 // pred_check
          %p237 = pneg %p112
        $region22: #{tpu_custom_call.1} parent=11 // pred_check_branch
          %239 = sbr.rel (%p237) target = $region24
        $region23: #{tpu_custom_call.1} parent=11 // pred_region
          _
        $region24: #{tpu_custom_call.1} parent=11 // pred_fallthru
          _
      $region12: #{tpu_custom_call.1} parent=5 // pred_fallthru
        _
      %p240 = scmp.lt.s32.totalorder %s23, 2
      // Predicated region
      $region25: #{tpu_custom_call.1} parent=5 // pred_check
        %p241 = pneg %p240
      $region26: #{tpu_custom_call.1} parent=5 // pred_check_branch
        %243 = sbr.rel (%p241) target = $region28
      $region27: #{tpu_custom_call.1} parent=5 // pred_region
        // Predicated region
        $region29: #{tpu_custom_call.1} parent=27 // pred_check
          %p244 = pneg %p43
        $region30: #{tpu_custom_call.1} parent=27 // pred_check_branch
          %246 = sbr.rel (%p244) target = $region32
        $region31: #{tpu_custom_call.1} parent=27 // pred_region
          %s247 = sand.u32 %s33, 1
          %s248 = scalar_lea.sflag [#allocation3], %s247
          %s249 = sand.u32 %s33, 1
          %s250 = smul.addr %s249, 8
          %s251 = scalar_lea.vmem [#allocation2], %s250
          %s253 = ssub.s32 128, 128
          %254 = vsyncadd %s248, %s253
          %s255 = smul.addr %s23, 128
          %s256 = scalar_lea.hbm %s0, %s255
          %s258 = sshll.u32 %s251, 4
          %s259 = int_to_ptr.vmem [resolvable:$true] %s258
          %261 = dma.hbm_to_vmem [thread:$0]  %s256, 128, %s259, %s248
        $region32: #{tpu_custom_call.1} parent=27 // pred_fallthru
          _
        // Predicated region
        $region33: #{tpu_custom_call.1} parent=27 // pred_check
          %p262 = pneg %p132
        $region34: #{tpu_custom_call.1} parent=27 // pred_check_branch
          %264 = sbr.rel (%p262) target = $region36
        $region35: #{tpu_custom_call.1} parent=27 // pred_region
          %p265 = scmp.lt.s32.totalorder %s23, 1
          %s266 = scalar_select %p265, %s23, 1
          %s267 = smul.addr %s266, 8
          %s268 = scalar_lea.vmem %s4, %s267
        $region36: #{tpu_custom_call.1} parent=27 // pred_fallthru
          _
        // Predicated region
        $region37: #{tpu_custom_call.1} parent=27 // pred_check
          %p269 = pneg %p158
        $region38: #{tpu_custom_call.1} parent=27 // pred_check_branch
          %271 = sbr.rel (%p269) target = $region40
        $region39: #{tpu_custom_call.1} parent=27 // pred_region
          %p272 = scmp.lt.s32.totalorder %s23, 1
          %s273 = scalar_select %p272, %s23, 1
          %s274 = smul.addr %s273, 8
          %s275 = scalar_lea.vmem %s5, %s274
        $region40: #{tpu_custom_call.1} parent=27 // pred_fallthru
          _
      $region28: #{tpu_custom_call.1} parent=5 // pred_fallthru
        _
      %p276 = scmp.le.s32.totalorder 1, %s23
      %p277 = scmp.lt.s32.totalorder %s23, 3
      %p278 = pnand %p276, %p277
      %p279 = pneg %p278
      // Predicated region
      $region41: #{tpu_custom_call.1} parent=5 // pred_check
        _
      $region42: #{tpu_custom_call.1} parent=5 // pred_check_branch
        %281 = sbr.rel (%p278) target = $region44
      $region43: #{tpu_custom_call.1} parent=5 // pred_region
        %s282 = ssub.s32 %s23, 1
        %s283 = sand.u32 %s36, 1
        %s284 = scalar_lea.sflag [#allocation3], %s283
        %s285 = sand.u32 %s36, 1
        %s286 = smul.addr %s285, 8
        %s287 = scalar_lea.vmem [#allocation2], %s286
        // Predicated region
        $region45: #{tpu_custom_call.1} parent=43 // pred_check
          %p288 = pneg %p49
        $region46: #{tpu_custom_call.1} parent=43 // pred_check_branch
          %290 = sbr.rel (%p288) target = $region48
        $region47: #{tpu_custom_call.1} parent=43 // pred_region
          %291 = dma.done %s284, 128
        $region48: #{tpu_custom_call.1} parent=43 // pred_fallthru
          _
        %s292 = sand.u32 %s36, 1
        %s293 = scalar_lea.sflag [#allocation3], %s292
        %s294 = sand.u32 %s36, 1
        %s295 = smul.addr %s294, 8
        %s296 = scalar_lea.vmem [#allocation2], %s295
        %p297 = pneg %p49
        %p298 = pneg %p46
        %p299 = pneg %p70
        %p300 = pneg %p67
        %p301 = pneg %p91
        %p302 = pneg %p88
        %p303 = pneg %p112
        %p304 = pneg %p109
        %p305 = scmp.lt.s32.totalorder %s28, 1
        %s306 = scalar_select %p305, %s28, 1
        %s307 = smul.addr %s306, 8
        %s308 = scalar_lea.vmem %s4, %s307
        %p309 = pneg %p138
        %p310 = pneg %p135
        %p311 = scmp.lt.s32.totalorder %s28, 1
        %s312 = scalar_select %p311, %s28, 1
        %s313 = smul.addr %s312, 8
        %s314 = scalar_lea.vmem %s5, %s313
        %p315 = pneg %p164
        %p316 = pneg %p161
        %p317 = pneg %p190
        %p318 = pneg %p187
        %s319 = sand.u32 %s177, 1
        %s320 = scalar_lea.sflag [#allocation4], %s319
        %s321 = sand.u32 %s177, 1
        %s322 = smul.addr %s321, 8
        %s323 = scalar_lea.vmem [#allocation5], %s322
        %p324 = pneg %p216
        %p325 = pneg %p213
        %s326 = sand.u32 %s203, 1
        %s327 = scalar_lea.sflag [#allocation7], %s326
        %s328 = sand.u32 %s203, 1
        %s329 = scalar_lea.vmem [#allocation6], %s328
        %p330 = scmp.lt.s32.totalorder %s28, 1
        %s331 = scalar_select %p330, %s28, 1
        %s332 = smul.addr %s331, 8
        %s333 = scalar_lea.vmem %s4, %s332
        %p334 = scmp.lt.s32.totalorder %s28, 1
        %s335 = scalar_select %p334, %s28, 1
        %s336 = smul.addr %s335, 8
        %s337 = scalar_lea.vmem %s5, %s336
        %v338 = vld [vmem:[%s287] sm:$0xff]
        %v339 = vld [vmem:[%s1] sm:$0xff]
        %v340 = vld [vmem:[%s1 + $0x8] sm:$0xff]
        %v341 = vld [vmem:[%s1 + $0x10] sm:$0xff]
        %v342 = vld [vmem:[%s1 + $0x18] sm:$0xff]
        %v343 = vld [vmem:[%s333] sm:$0xff]
        %vm344 = vcmp.gt.f32.partialorder %v343, 0.0
        %v345 = vld [vmem:[%s2] sm:$0x1]
        %v347 = vlaneseq
        %v348 = vshrl.u32 %v347, 7
        %v349 = vsub.s32 0, %v348
        %v350 = vrot.slane %v345, %v349
        %vm352 = vcmask 261120
        %v354 = vsel %vm352, %v338, 0
        %356 = vmatprep.subr.mxu0 0.0
        %357 = vmatpush1.msra.mxu0 %v339
        %358 = vmatprep.subr.mxu0 0.0
        %359 = vmatpush1.msra.mxu0 %v340
        %360 = vmatprep.subr.mxu0 0.0
        %361 = vmatpush1.msra.mxu0 %v341
        %362 = vmatprep.subr.mxu0 0.0
        %363 = vmatpush1.msra.mxu0 %v342
        %364 = vmatprep.subr.mxu0 0.0
        %365 = vmatpush1.msra.mxu0 0.0
        %366 = vmatprep.subr.mxu0 0.0
        %367 = vmatpush1.msra.mxu0 0.0
        %368 = vmatprep.subr.mxu0 0.0
        %369 = vmatpush1.msra.mxu0 0.0
        %370 = vmatprep.subr.mxu0 0.0
        %371 = vmatpush1.msra.mxu0 0.0
        %372 = vmatprep.subr.mxu0 0.0
        %373 = vmatpush1.msra.mxu0 0.0
        %374 = vmatprep.subr.mxu0 0.0
        %375 = vmatpush1.msra.mxu0 0.0
        %376 = vmatprep.subr.mxu0 0.0
        %377 = vmatpush1.msra.mxu0 0.0
        %378 = vmatprep.subr.mxu0 0.0
        %379 = vmatpush1.msra.mxu0 0.0
        %380 = vmatprep.subr.mxu0 0.0
        %381 = vmatpush1.msra.mxu0 0.0
        %382 = vmatprep.subr.mxu0 0.0
        %383 = vmatpush1.msra.mxu0 0.0
        %384 = vmatprep.subr.mxu0 0.0
        %385 = vmatpush1.msra.mxu0 0.0
        %386 = vmatprep.subr.mxu0 0.0
        %387 = vmatpush1.msra.mxu0 0.0
        %388 = vmatprep.subr.mxu0 0.0
        %389 = vmatpush1.msra.mxu0 0.0
        %390 = vmatprep.subr.mxu0 0.0
        %391 = vmatpush1.msra.mxu0 0.0
        %392 = vmatprep.subr.mxu0 0.0
        %393 = vmatpush1.msra.mxu0 0.0
        %394 = vmatprep.subr.mxu0 0.0
        %395 = vmatpush1.msra.mxu0 0.0
        %396 = vmatprep.subr.mxu0 0.0
        %397 = vmatpush1.msra.mxu0 0.0
        %398 = vmatprep.subr.mxu0 0.0
        %399 = vmatpush1.msra.mxu0 0.0
        %400 = vmatprep.subr.mxu0 0.0
        %401 = vmatpush1.msra.mxu0 0.0
        %402 = vmatprep.subr.mxu0 0.0
        %403 = vmatpush1.msra.mxu0 0.0
        %404 = vmatprep.subr.mxu0 0.0
        %405 = vmatpush1.msra.mxu0 0.0
        %406 = vmatprep.subr.mxu0 0.0
        %407 = vmatpush1.msra.mxu0 0.0
        %408 = vmatprep.subr.mxu0 0.0
        %409 = vmatpush1.msra.mxu0 0.0
        %410 = vmatprep.subr.mxu0 0.0
        %411 = vmatpush1.msra.mxu0 0.0
        %412 = vmatprep.subr.mxu0 0.0
        %413 = vmatpush1.msra.mxu0 0.0
        %414 = vmatprep.subr.mxu0 0.0
        %415 = vmatpush1.msra.mxu0 0.0
        %416 = vmatprep.subr.mxu0 0.0
        %417 = vmatpush1.msra.mxu0 0.0
        %418 = vmatprep.subr.mxu0 0.0
        %419 = vmatpush1.msra.mxu0 0.0
        %420 = vmatprep.mubr.f32.mxu0 0.0
        %421 = vmatmul.mubr.f32.gmra.mrb[0].mxu0 %v354
        %v422 = vpop.f32.mrb[0].mxu0
        %v423 = vadd.f32 %v350, %v422
        %v424 = vpop.f32.mrb[0].mxu0
        %425 = vdwg.mxu0
        %v426 = vsel %vm344, 1, 0
        %427 = vset.pattern.permute.xlu0 0
        %428 = vperm.xlu0 %427, %v426
        %v429 = vpop.permute.xlu0 %428
        %vm430 = vcmp.eq.s32.totalorder %v429, 1
        %v431 = vsel %vm430, %v423, -1e+30
        %v432 = vld [vmem:[%s3] sm:$0x1]
        %v434 = vlaneseq
        %v435 = vshrl.u32 %v434, 7
        %v436 = vsub.s32 0, %v435
        %v437 = vrot.slane %v432, %v436
        %v439 = vadd.f32 %v431, %v437
        %440 = vmax.xlane.f32.xlu0 %v439
        %v441 = vpop.xlane.xlu0 %440
        %v442 = vsub.f32 %v439, %v441
        %v443 = vmul.f32 %v442, 1.442695
        %v444 = vpow.pop %v443
        %445 = vadd.xlane.f32.xlu0 %v444
        %v446 = vpop.xlane.xlu0 %445
        %v447 = vrcp.pop %v446
        %v448 = vmul.f32 %v444, %v447
        %449 = vst [vmem:[%s323] sm:$0xff] %v448
        %v450 = vld [vmem:[%s337] sm:$0xff]
        %s451 = smul.u32 %s28, 8
        %v452 = vlaneseq
        %v453 = vshrl.u32 %v452, 7
        %v454 = vstv %s451
        %v455 = vadd.s32 %v454, %v453
        %vm456 = vcmp.lt.s32.totalorder %v455, 16
        %vm457 = vcmp.ne.s32.totalorder %v450, 0
        %vm458 = vmand %vm456, %vm457
        %v459 = vlog2.pop %v446
        %v460 = vmul.f32 %v459, 0.6931472
        %v461 = vadd.f32 %v441, %v460
        %v462 = vlaneseq
        %v463 = vand.u32 %v462, 127
        %464 = vset.pattern.permute.xlu0 0
        %465 = vperm.xlu0 %464, %v450
        %v466 = vpop.permute.xlu0 %465
        %vm467 = vcmp.eq.s32.totalorder %v463, %v466
        %v468 = vsel %vm467, %v439, 0.0
        %469 = vadd.xlane.f32.xlu0 %v468
        %v470 = vpop.xlane.xlu0 %469
        %v471 = vsub.f32 %v461, %v470
        %v472 = vsel %vm458, %v471, 0.0
        %v473 = vsel %vm458, 1.0, 0.0
        %vm474 = vcmp.eq.s32.totalorder %v463, 0
        %vm475 = vcmask 7168
        %v476 = vsel %vm475, %v472, 0.0
        %477 = vadd.xlane.f32.xlu0 %v476
        %v478 = vpop.xlane.xlu0 %477
        %v479 = vrot.slane %v478, 4
        %v480 = vadd.f32 %v478, %v479
        %v481 = vrot.slane %v480, 2
        %v482 = vadd.f32 %v480, %v481
        %v483 = vrot.slane %v482, 1
        %v484 = vadd.f32 %v482, %v483
        %s485 = vtos %v484
        %vm486 = vcmp.eq.s32.totalorder %v463, 1
        %v487 = vsel %vm475, %v473, 0.0
        %488 = vadd.xlane.f32.xlu0 %v487
        %v489 = vpop.xlane.xlu0 %488
        %v490 = vrot.slane %v489, 4
        %v491 = vadd.f32 %v489, %v490
        %v492 = vrot.slane %v491, 2
        %v493 = vadd.f32 %v491, %v492
        %v494 = vrot.slane %v493, 1
        %v495 = vadd.f32 %v493, %v494
        %s496 = vtos %v495
        %v497 = vstv %s496
        %v498 = vsel %vm486, %v497, 0.0
        %v499 = vstv %s485
        %v500 = vsel %vm474, %v499, %v498
        %501 = vst [vmem:[%s329] sm:$0x1] %v500
        %s502 = sand.u32 %s177, 1
        %s503 = scalar_lea.sflag [#allocation4], %s502
        %s504 = sand.u32 %s177, 1
        %s505 = smul.addr %s504, 8
        %s506 = scalar_lea.vmem [#allocation5], %s505
        %s507 = sand.u32 %s203, 1
        %s508 = scalar_lea.sflag [#allocation7], %s507
        %s509 = sand.u32 %s203, 1
        %s510 = scalar_lea.vmem [#allocation6], %s509
        // Predicated region
        $region49: #{tpu_custom_call.1} parent=43 // pred_check
          %p511 = pneg %p187
        $region50: #{tpu_custom_call.1} parent=43 // pred_check_branch
          %513 = sbr.rel (%p511) target = $region52
        $region51: #{tpu_custom_call.1} parent=43 // pred_region
          %s515 = ssub.s32 128, 128
          %516 = vsyncadd %s503, %s515
          %s517 = smul.addr %s28, 128
          %s518 = scalar_lea.hbm %s6, %s517
          %s520 = sshll.u32 %s506, 4
          %s521 = int_to_ptr.vmem [resolvable:$true] %s520
          %523 = dma.vmem_to_hbm [thread:$0]  %s521, 128, %s518, %s503
        $region52: #{tpu_custom_call.1} parent=43 // pred_fallthru
          _
        // Predicated region
        $region53: #{tpu_custom_call.1} parent=43 // pred_check
          %p524 = pneg %p213
        $region54: #{tpu_custom_call.1} parent=43 // pred_check_branch
          %526 = sbr.rel (%p524) target = $region56
        $region55: #{tpu_custom_call.1} parent=43 // pred_region
          %s528 = ssub.s32 16, 16
          %529 = vsyncadd %s508, %s528
          %s530 = smul.addr %s28, 16
          %s531 = scalar_lea.hbm %s7, %s530
          %s533 = sshll.u32 %s510, 4
          %s534 = int_to_ptr.vmem [resolvable:$true] %s533
          %536 = dma.vmem_to_hbm [thread:$0]  %s534, 16, %s531, %s508
        $region56: #{tpu_custom_call.1} parent=43 // pred_fallthru
          _
      $region44: #{tpu_custom_call.1} parent=5 // pred_fallthru
        _
      %p537 = scmp.le.s32.totalorder 2, %s23
      // Predicated region
      $region57: #{tpu_custom_call.1} parent=5 // pred_check
        %p538 = pneg %p537
      $region58: #{tpu_custom_call.1} parent=5 // pred_check_branch
        %540 = sbr.rel (%p538) target = $region60
      $region59: #{tpu_custom_call.1} parent=5 // pred_region
        %s541 = ssub.s32 %s23, 2
        // Predicated region
        $region61: #{tpu_custom_call.1} parent=59 // pred_check
          %p542 = pneg %p193
        $region62: #{tpu_custom_call.1} parent=59 // pred_check_branch
          %544 = sbr.rel (%p542) target = $region64
        $region63: #{tpu_custom_call.1} parent=59 // pred_region
          %s545 = sand.u32 %s178, 1
          %s546 = scalar_lea.sflag [#allocation4], %s545
          %s547 = sand.u32 %s178, 1
          %s548 = smul.addr %s547, 8
          %s549 = scalar_lea.vmem [#allocation5], %s548
          %550 = dma.done %s546, 128
        $region64: #{tpu_custom_call.1} parent=59 // pred_fallthru
          _
        // Predicated region
        $region65: #{tpu_custom_call.1} parent=59 // pred_check
          %p551 = pneg %p219
        $region66: #{tpu_custom_call.1} parent=59 // pred_check_branch
          %553 = sbr.rel (%p551) target = $region68
        $region67: #{tpu_custom_call.1} parent=59 // pred_region
          %s554 = sand.u32 %s204, 1
          %s555 = scalar_lea.sflag [#allocation7], %s554
          %s556 = sand.u32 %s204, 1
          %s557 = scalar_lea.vmem [#allocation6], %s556
          %558 = dma.done %s555, 16
        $region68: #{tpu_custom_call.1} parent=59 // pred_fallthru
          _
      $region60: #{tpu_custom_call.1} parent=5 // pred_fallthru
        _
    $region6: #{tpu_custom_call.1} parent=1 // loop_footer
      %s27 = sadd.s32 1, %s23
    $region7: #{tpu_custom_call.1} parent=1 // loop_footer_branch
      %22 = sbr.rel target = $region3
    $region8: #{tpu_custom_call.1} parent=1 // loop_exit
      _
    %559 = vsyncpa [#allocation3], 1
    %s560 = scalar_lea.sflag [#allocation3], 1
    %561 = vsyncpa %s560, 1
    %562 = vsyncpa [#allocation4], 1
    %s563 = scalar_lea.sflag [#allocation4], 1
    %564 = vsyncpa %s563, 1
    %565 = vsyncpa [#allocation7], 1
    %s566 = scalar_lea.sflag [#allocation7], 1
    %567 = vsyncpa %s566, 1

</llo_original>
